<compile_context>
chip_gen: v7x
topology: tpu7x:2x2x1
jax: 0.10.0
libtpu: 0.0.40
codegen_flags: <defaults>
</compile_context>

<pallas_src>
import functools

import jax
import jax.numpy as jnp
from jax.experimental import pallas as pl
from jax.experimental.pallas import tpu as pltpu


EPSILON = 1e-5
_LANE = 128
_SUBLANE = 8
_MAX_LANE_TILE = 8192  # lane-tile cap for the two-pass path


def _round_up(v, m):
    return (v + m - 1) // m * m


@functools.lru_cache(maxsize=None)
def _tpu_profile():
    """Returns (max_block_bytes, vmem_limit_cap, two_tensorcores)."""
    vmem_cap = 64 * 2**20  # conservative default (v7x-sized) if query fails
    try:
        info = pltpu.get_tpu_info()
        cap = int(getattr(info, "vmem_capacity_bytes", 0))
        if cap > 0:
            vmem_cap = cap
    except Exception:
        pass
    if vmem_cap <= 64 * 2**20:
        # v7x-like: 64 MiB/TC physical, 2 TensorCores per chip.
        return 4 * 2**20, 48 * 2**20, True
    # v5e / v6e: 128 MiB VMEM, single TensorCore.
    return 16 * 2**20, 96 * 2**20, False


def _vmem_limit(block_bytes, itemsize, cap_bytes):
    # 2x double-buffered (in + out) blocks + one f32 working copy + params/slack.
    f32_block = (block_bytes // max(itemsize, 1)) * 4
    budget = 4 * block_bytes + f32_block + 4 * 2**20
    return int(min(cap_bytes, max(32 * 2**20, budget)))


# ----------------------------- kernels -------------------------------------


def _gct_fused_kernel(x_ref, p_ref, o_ref):
    """x_ref: (NB, C, HW); p_ref: (3, C, 1) = [alpha, gamma, beta]; o_ref like x."""
    alpha = p_ref[0]                                    # (C, 1)
    gamma = p_ref[1]
    beta = p_ref[2]

    # First read of the VMEM-resident block: per-channel sum of squares (lane
    # reduce on the XLU).  The f32 upcast is not kept live for the final store;
    # x_ref is re-read below to avoid materializing a full f32 block copy.
    xf = x_ref[...].astype(jnp.float32)
    sumsq = jnp.sum(xf * xf, axis=-1, keepdims=True)    # (NB, C, 1)

    embedding = jnp.sqrt(sumsq + EPSILON) * alpha       # (NB, C, 1)
    # Cross-channel normalization; rsqrt/tanh/softplus ride the EUP slot.
    mean_sq = jnp.mean(embedding * embedding, axis=1, keepdims=True)   # (NB,1,1)
    norm = gamma * jax.lax.rsqrt(mean_sq + EPSILON)     # (NB, C, 1)
    gate = 1.0 + jnp.tanh(jax.nn.softplus(embedding * norm + beta))    # (NB, C, 1)

    # Second read of the input block for the elementwise apply.
    o_ref[...] = (x_ref[...].astype(jnp.float32) * gate).astype(o_ref.dtype)


def _make_sumsq_kernel(hw, lane_tile):
    """Per-(n, c) sum of squares over lane tiles; ragged tail masked in-kernel."""
    ragged = (hw % lane_tile) != 0

    def kernel(x_ref, o_ref):
        t = pl.program_id(2)

        @pl.when(t == 0)
        def _():
            o_ref[...] = jnp.zeros_like(o_ref)

        x = x_ref[...].astype(jnp.float32)
        if ragged:
            pos = t * lane_tile + jax.lax.broadcasted_iota(jnp.int32, x.shape, 2)
            x = jnp.where(pos < hw, x, 0.0)
        o_ref[...] += jnp.sum(x * x, axis=-1, keepdims=True)

    return kernel


def _apply_gate_kernel(x_ref, gate_ref, o_ref):
    o_ref[...] = (x_ref[...].astype(jnp.float32) * gate_ref[...]).astype(o_ref.dtype)


# ----------------------------- wrappers ------------------------------------


def _gct_fused(x3, params, nb, vmem_limit):
    n, c, hw = x3.shape
    blk = pl.BlockSpec((nb, c, hw), lambda i: (i, 0, 0))
    return pl.pallas_call(
        _gct_fused_kernel,
        out_shape=jax.ShapeDtypeStruct((n, c, hw), x3.dtype),
        grid_spec=pltpu.PrefetchScalarGridSpec(
            num_scalar_prefetch=0,
            grid=(n // nb,),
            in_specs=[blk, pl.BlockSpec((3, c, 1), lambda i: (0, 0, 0))],
            out_specs=blk,
        ),
        compiler_params=pltpu.CompilerParams(
            dimension_semantics=("parallel",),
            vmem_limit_bytes=vmem_limit,
        ),
    )(x3, params)


def _gct_two_pass(x3, alpha, gamma, beta, nb, ct, lane_tile, vmem_limit):
    n, c, hw = x3.shape
    grid = (n // nb, pl.cdiv(c, ct), pl.cdiv(hw, lane_tile))
    x_spec = pl.BlockSpec((nb, ct, lane_tile), lambda i, j, t: (i, j, t))
    vec_spec = pl.BlockSpec((nb, ct, 1), lambda i, j, t: (i, j, 0))

    # Pass 1: per-(n, c) sum of squares.  HW (reduction) axis is last and
    # "arbitrary"; the tiny output block stays VMEM-resident across it.
    sumsq = pl.pallas_call(
        _make_sumsq_kernel(hw, lane_tile),
        out_shape=jax.ShapeDtypeStruct((n, c, 1), jnp.float32),
        grid_spec=pltpu.PrefetchScalarGridSpec(
            num_scalar_prefetch=0,
            grid=grid,
            in_specs=[x_spec],
            out_specs=vec_spec,
        ),
        compiler_params=pltpu.CompilerParams(
            dimension_semantics=("parallel", "parallel", "arbitrary"),
            vmem_limit_bytes=vmem_limit,
        ),
    )(x3)

    # Gate math is O(N*C): compute it in plain JAX between the two sweeps.
    a = alpha.reshape(1, c, 1).astype(jnp.float32)
    g = gamma.reshape(1, c, 1).astype(jnp.float32)
    b = beta.reshape(1, c, 1).astype(jnp.float32)
    embedding = jnp.sqrt(sumsq + EPSILON) * a
    mean_sq = jnp.mean(embedding * embedding, axis=1, keepdims=True)
    norm = g * jax.lax.rsqrt(mean_sq + EPSILON)
    gate = 1.0 + jnp.tanh(jax.nn.softplus(embedding * norm + b))        # (N,C,1)

    # Pass 2: elementwise x * gate; out-of-bounds lanes of the ragged tail
    # block are dropped by the bounded writeback DMA, so no wrapper slice.
    # TODO(synk): benchmark pipeline_mode=pl.Buffered(3) on the x input for
    # small lane tiles on v5e/v6e (VMEM headroom, lower HBM bandwidth).
    return pl.pallas_call(
        _apply_gate_kernel,
        out_shape=jax.ShapeDtypeStruct((n, c, hw), x3.dtype),
        grid_spec=pltpu.PrefetchScalarGridSpec(
            num_scalar_prefetch=0,
            grid=grid,
            in_specs=[x_spec, vec_spec],
            out_specs=x_spec,
        ),
        compiler_params=pltpu.CompilerParams(
            dimension_semantics=("parallel", "parallel", "parallel"),
            vmem_limit_bytes=vmem_limit,
        ),
    )(x3, gate)


def gct_forward(x, alpha, gamma, beta, *, max_block_bytes=None):
    """GCT (l2 mode) forward.  x: (N, C, H, W); alpha/gamma/beta: (1, C, 1, 1)."""
    # TODO(synk): only the default mode='l2' (after_relu irrelevant) is
    # implemented; the 'l1' config branch of the PyTorch module is not.
    n, c, h, w = x.shape
    hw = h * w
    itemsize = x.dtype.itemsize
    default_block, vmem_cap, two_tc = _tpu_profile()
    if max_block_bytes is None:
        max_block_bytes = default_block

    x3 = x.reshape(n, c, hw)

    # VMEM accounting uses the (8, 128)-padded footprint of one batch element
    # (the HBM array itself stays unpadded; no wrapper-side pad/slice copies).
    c_pad = _round_up(c, _SUBLANE)
    hw_pad = _round_up(hw, _LANE)
    bytes_per_batch = c_pad * hw_pad * itemsize

    if bytes_per_batch <= max_block_bytes:
        # -------- fused single-pass path --------
        # Fuse NB batch elements per grid step (largest divisor of N under the
        # byte cap) to amortize per-step overhead and fill sublanes when C < 8.
        nb = 1
        for cand in range(n, 0, -1):
            if n % cand == 0 and cand * bytes_per_batch <= max_block_bytes:
                nb = cand
                break
        # Keep >= 2 grid steps on the "parallel" axis only on two-TensorCore
        # parts (v7x); on v5e/v6e a split just shrinks blocks for nothing.
        if two_tc and nb == n and n > 1 and n * bytes_per_batch > 2 * 2**20:
            for cand in range(n // 2, 0, -1):
                if n % cand == 0:
                    nb = cand
                    break

        # Single stacked (3, C, 1) f32 parameter buffer: one small DMA instead
        # of three lane-sparse parameter inputs.
        params = jnp.stack(
            [alpha.reshape(c, 1), gamma.reshape(c, 1), beta.reshape(c, 1)],
            axis=0,
        ).astype(jnp.float32)

        block_bytes = nb * bytes_per_batch
        vmem_limit = _vmem_limit(block_bytes, itemsize, vmem_cap)
        out3 = _gct_fused(x3, params, nb, vmem_limit)
    else:
        # -------- two-pass path for large feature maps --------
        # Tile channels only when a single 128-lane channel slab would blow the
        # block budget (very large C on small-VMEM parts).
        ct = c
        if c_pad * _LANE * itemsize > max_block_bytes and c > _SUBLANE:
            ct = max(
                _SUBLANE,
                (max_block_bytes // (_LANE * itemsize)) // _SUBLANE * _SUBLANE,
            )
            ct = min(ct, c)
        # Fuse batch elements to fill sublanes when C is small.
        nb = 1
        if ct == c and c < _SUBLANE:
            divisors = [d for d in range(1, n + 1) if n % d == 0]
            fitting = [
                d for d in divisors
                if d * c_pad * _LANE * itemsize <= max_block_bytes
            ]
            if fitting:
                nb = next((d for d in fitting if d * c >= _SUBLANE), fitting[-1])

        ct_pad = _round_up(ct, _SUBLANE)
        lane_budget = (max_block_bytes // (nb * ct_pad * itemsize)) // _LANE * _LANE
        lane_tile = max(_LANE, min(lane_budget, _MAX_LANE_TILE, hw_pad))

        tile_bytes = nb * ct_pad * lane_tile * itemsize
        vmem_limit = _vmem_limit(tile_bytes, itemsize, vmem_cap)
        out3 = _gct_two_pass(x3, alpha, gamma, beta, nb, ct, lane_tile, vmem_limit)

    return out3.reshape(n, c, h, w)


# ----------------------------- reference -----------------------------------


def gct_reference(x, alpha, gamma, beta):
    # Pure-JAX reference matching the PyTorch l2-mode forward exactly.
    embedding = jnp.sqrt(jnp.sum(x ** 2, axis=(2, 3), keepdims=True) + EPSILON) * alpha
    norm = gamma / jnp.sqrt(jnp.mean(embedding ** 2, axis=1, keepdims=True) + EPSILON)
    gate = 1.0 + jnp.tanh(jax.nn.softplus(embedding * norm + beta))
    return x * gate


if __name__ == "__main__":
    key = jax.random.PRNGKey(0)
    kx, kg, kb, kx2, kx3 = jax.random.split(key, 5)

    n, c, h, w = 2, 4, 16, 16
    x = jax.random.normal(kx, (n, c, h, w), dtype=jnp.float32)

    # Parameter shapes from GCT.__init__: (1, C, 1, 1).  alpha init = ones;
    # gamma/beta given small deterministic values so the gate is non-trivial.
    alpha = jnp.ones((1, c, 1, 1), dtype=jnp.float32)
    gamma = 0.1 * jax.random.normal(kg, (1, c, 1, 1), dtype=jnp.float32)
    beta = 0.1 * jax.random.normal(kb, (1, c, 1, 1), dtype=jnp.float32)

    # 1) Fused single-pass path (HW multiple of 128, batch fusion).
    out = jax.block_until_ready(gct_forward(x, alpha, gamma, beta))
    ref = gct_reference(x, alpha, gamma, beta)
    assert out.shape == (n, c, h, w)
    assert jnp.allclose(out, ref, atol=1e-5, rtol=1e-5), "fused path mismatch"

    # 2) Fused path with a ragged lane tail (HW = 100, no wrapper pad/slice).
    x_odd = jax.random.normal(kx2, (n, c, 10, 10), dtype=jnp.float32)
    out_odd = jax.block_until_ready(gct_forward(x_odd, alpha, gamma, beta))
    ref_odd = gct_reference(x_odd, alpha, gamma, beta)
    assert jnp.allclose(out_odd, ref_odd, atol=1e-5, rtol=1e-5), "fused ragged mismatch"

    # 3) Two-pass path, forced via a tiny block cap (HW divides the lane tile).
    out_tp = jax.block_until_ready(
        gct_forward(x, alpha, gamma, beta, max_block_bytes=2048)
    )
    assert jnp.allclose(out_tp, ref, atol=1e-5, rtol=1e-5), "two-pass path mismatch"

    # 4) Two-pass path with a ragged lane tail (in-kernel masking).
    out_tp_odd = jax.block_until_ready(
        gct_forward(x_odd, alpha, gamma, beta, max_block_bytes=1024)
    )
    assert jnp.allclose(out_tp_odd, ref_odd, atol=1e-5, rtol=1e-5), \
        "two-pass ragged mismatch"

    # 5) Two-pass path with channel tiling (larger C, tiny block cap).
    c_big = 16
    x_big = jax.random.normal(kx3, (n, c_big, 16, 16), dtype=jnp.float32)
    alpha_b = jnp.ones((1, c_big, 1, 1), dtype=jnp.float32)
    gamma_b = 0.1 * jax.random.normal(kg, (1, c_big, 1, 1), dtype=jnp.float32)
    beta_b = 0.1 * jax.random.normal(kb, (1, c_big, 1, 1), dtype=jnp.float32)
    out_ct = jax.block_until_ready(
        gct_forward(x_big, alpha_b, gamma_b, beta_b, max_block_bytes=4096)
    )
    ref_ct = gct_reference(x_big, alpha_b, gamma_b, beta_b)
    assert jnp.allclose(out_ct, ref_ct, atol=1e-5, rtol=1e-5), \
        "two-pass channel-tiled mismatch"

    print("KERNEL_OK")
</pallas_src>

<mosaic_0001>
module attributes {stable_mosaic.version = 11 : i64} {
  func.func @_gct_fused_kernel(%arg0: i32, %arg1: memref<2x4x256xf32, #tpu.memory_space<vmem>>, %arg2: memref<3x4x1xf32, #tpu.memory_space<vmem>>, %arg3: memref<2x4x256xf32, #tpu.memory_space<vmem>>) attributes {dimension_semantics = [#tpu.dimension_semantics<parallel>], iteration_bounds = array<i64: 1>, scalar_prefetch = 0 : i64, scratch_operands = 0 : i64, tpu.core_type = #tpu.core_type<tc>, window_params = [{transform_indices = @transform_0, window_bounds = array<i64: 2, 4, 256>}, {pipeline_mode = #tpu.pipeline_mode<synchronous>, transform_indices = @transform_1, window_bounds = array<i64: 3, 4, 1>}, {transform_indices = @transform_2, window_bounds = array<i64: 2, 4, 256>}]} {
    %c0 = arith.constant 0 : index
    %c0_0 = arith.constant 0 : index
    %c0_1 = arith.constant 0 : index
    %0 = vector.load %arg2[%c0, %c0_0, %c0_1] : memref<3x4x1xf32, #tpu.memory_space<vmem>>, vector<1x4x1xf32>
    %1 = vector.shape_cast %0 : vector<1x4x1xf32> to vector<4x1xf32>
    %c1 = arith.constant 1 : index
    %c0_2 = arith.constant 0 : index
    %c0_3 = arith.constant 0 : index
    %2 = vector.load %arg2[%c1, %c0_2, %c0_3] : memref<3x4x1xf32, #tpu.memory_space<vmem>>, vector<1x4x1xf32>
    %3 = vector.shape_cast %2 : vector<1x4x1xf32> to vector<4x1xf32>
    %c2 = arith.constant 2 : index
    %c0_4 = arith.constant 0 : index
    %c0_5 = arith.constant 0 : index
    %4 = vector.load %arg2[%c2, %c0_4, %c0_5] : memref<3x4x1xf32, #tpu.memory_space<vmem>>, vector<1x4x1xf32>
    %5 = vector.shape_cast %4 : vector<1x4x1xf32> to vector<4x1xf32>
    %c0_6 = arith.constant 0 : index
    %c0_7 = arith.constant 0 : index
    %c0_8 = arith.constant 0 : index
    %6 = vector.load %arg1[%c0_6, %c0_7, %c0_8] : memref<2x4x256xf32, #tpu.memory_space<vmem>>, vector<2x4x256xf32>
    %7 = arith.mulf %6, %6 : vector<2x4x256xf32>
    %cst = arith.constant dense<0.000000e+00> : vector<2x4xf32>
    %8 = vector.multi_reduction <add>, %7, %cst [2] : vector<2x4x256xf32> to vector<2x4xf32>
    %9 = vector.shape_cast %8 : vector<2x4xf32> to vector<2x4x1xf32>
    %cst_9 = arith.constant 9.99999974E-6 : f32
    %10 = vector.broadcast %cst_9 : f32 to vector<2x4x1xf32>
    %11 = arith.addf %9, %10 : vector<2x4x1xf32>
    %12 = math.sqrt %11 : vector<2x4x1xf32>
    %13 = vector.shape_cast %1 : vector<4x1xf32> to vector<1x4x1xf32>
    %14 = vector.broadcast %13 : vector<1x4x1xf32> to vector<2x4x1xf32>
    %15 = arith.mulf %12, %14 : vector<2x4x1xf32>
    %16 = arith.mulf %15, %15 : vector<2x4x1xf32>
    %cst_10 = arith.constant dense<0.000000e+00> : vector<2x1xf32>
    %17 = vector.multi_reduction <add>, %16, %cst_10 [1] : vector<2x4x1xf32> to vector<2x1xf32>
    %18 = vector.shape_cast %17 : vector<2x1xf32> to vector<2x1x1xf32>
    %cst_11 = arith.constant 4.000000e+00 : f32
    %19 = vector.broadcast %cst_11 : f32 to vector<2x1x1xf32>
    %20 = arith.divf %18, %19 : vector<2x1x1xf32>
    %cst_12 = arith.constant 9.99999974E-6 : f32
    %21 = vector.broadcast %cst_12 : f32 to vector<2x1x1xf32>
    %22 = arith.addf %20, %21 : vector<2x1x1xf32>
    %23 = math.rsqrt %22 : vector<2x1x1xf32>
    %24 = vector.shape_cast %3 : vector<4x1xf32> to vector<1x4x1xf32>
    %25 = vector.broadcast %24 : vector<1x4x1xf32> to vector<2x4x1xf32>
    %26 = vector.broadcast %23 : vector<2x1x1xf32> to vector<2x4x1xf32>
    %27 = arith.mulf %25, %26 : vector<2x4x1xf32>
    %28 = arith.mulf %15, %27 : vector<2x4x1xf32>
    %29 = vector.shape_cast %5 : vector<4x1xf32> to vector<1x4x1xf32>
    %30 = vector.broadcast %29 : vector<1x4x1xf32> to vector<2x4x1xf32>
    %31 = arith.addf %28, %30 : vector<2x4x1xf32>
    %cst_13 = arith.constant 0.000000e+00 : f32
    %32 = vector.broadcast %cst_13 : f32 to vector<2x4x1xf32>
    %33 = arith.maximumf %31, %32 : vector<2x4x1xf32>
    %34 = vector.broadcast %cst_13 : f32 to vector<2x4x1xf32>
    %35 = arith.subf %31, %34 : vector<2x4x1xf32>
    %36 = arith.cmpf one, %35, %35 : vector<2x4x1xf32>
    %37 = vector.broadcast %cst_13 : f32 to vector<2x4x1xf32>
    %38 = arith.addf %31, %37 : vector<2x4x1xf32>
    %39 = math.absf %35 : vector<2x4x1xf32>
    %cst_14 = arith.constant 0.000000e+00 : f32
    %40 = vector.broadcast %cst_14 : f32 to vector<2x4x1xf32>
    %41 = arith.subf %40, %39 : vector<2x4x1xf32>
    %42 = math.exp %41 : vector<2x4x1xf32>
    %43 = math.log1p %42 : vector<2x4x1xf32>
    %44 = arith.addf %33, %43 : vector<2x4x1xf32>
    %45 = arith.select %36, %38, %44 : vector<2x4x1xi1>, vector<2x4x1xf32>
    %46 = math.tanh %45 : vector<2x4x1xf32>
    %cst_15 = arith.constant 1.000000e+00 : f32
    %47 = vector.broadcast %cst_15 : f32 to vector<2x4x1xf32>
    %48 = arith.addf %47, %46 : vector<2x4x1xf32>
    %c0_16 = arith.constant 0 : index
    %c0_17 = arith.constant 0 : index
    %c0_18 = arith.constant 0 : index
    %49 = vector.load %arg1[%c0_16, %c0_17, %c0_18] : memref<2x4x256xf32, #tpu.memory_space<vmem>>, vector<2x4x256xf32>
    %50 = vector.broadcast %48 : vector<2x4x1xf32> to vector<2x4x256xf32>
    %51 = arith.mulf %49, %50 : vector<2x4x256xf32>
    %c0_19 = arith.constant 0 : index
    %c0_20 = arith.constant 0 : index
    %c0_21 = arith.constant 0 : index
    %52 = vector.load %arg3[%c0_19, %c0_20, %c0_21] : memref<2x4x256xf32, #tpu.memory_space<vmem>>, vector<2x4x256xf32>
    tpu.vector_store %arg3[%c0_19, %c0_20, %c0_21], %51 {strides = array<i32>} : memref<2x4x256xf32, #tpu.memory_space<vmem>>, vector<2x4x256xf32>,
    return
  }
  func.func @transform_0(%arg0: i32) -> (i32, i32, i32) {
    %c0_i32 = arith.constant 0 : i32
    %c0_i32_0 = arith.constant 0 : i32
    %c0_i32_1 = arith.constant 0 : i32
    return %arg0, %c0_i32, %c0_i32_0 : i32, i32, i32
  }
  func.func @transform_1(%arg0: i32) -> (i32, i32, i32) {
    %c0_i32 = arith.constant 0 : i32
    %c0_i32_0 = arith.constant 0 : i32
    %c0_i32_1 = arith.constant 0 : i32
    %c0_i32_2 = arith.constant 0 : i32
    return %c0_i32, %c0_i32_0, %c0_i32_1 : i32, i32, i32
  }
  func.func @transform_2(%arg0: i32) -> (i32, i32, i32) {
    %c0_i32 = arith.constant 0 : i32
    %c0_i32_0 = arith.constant 0 : i32
    %c0_i32_1 = arith.constant 0 : i32
    return %arg0, %c0_i32, %c0_i32_0 : i32, i32, i32
  }
}

</mosaic_0001>

<llo_original>
// kernel: tpu_custom_call.1
$region0: #{tpu_custom_call.1}
  #allocation0 [shape = 'u32[]', space=smem, size = 0x4, offset = 0x4, fixed_abs, tag = 'smem constant byte address 0x4 - core index']
  #allocation1 [shape = 'u32[144,128]{1,0:T(1,128)}', space=vmem, size = 0x12000, scoped, tag = 'internal scratch']
  %s0 = inlined_call_operand.hbm [shape: f32[2,4,256], index: 0, kind: input, shape index: {}]
  %s1 = inlined_call_operand.vmem [shape: f32[3,4,1], index: 1, kind: input, shape index: {}]
  %s2 = inlined_call_operand.hbm [shape: f32[2,4,256], index: 2, kind: output, shape index: {}]
  %s3 = sld [smem:[#allocation0]]
  $region22: #{tpu_custom_call.1} parent=0
    _
  %s5 = ssub.s32 1, %s3
  %s6 = scalar_select 0, %s5, %s3
  $region1: #{tpu_custom_call.1} parent=0
    #allocation2 [shape = 'u8[8192]{0}', space=vmem, size = 0x2000, scoped, tag = 'input window, operand 0, single buffered']
    #allocation3 [shape = 's32[1]{0}', space=sflag, size = 0x4, scoped, tag = 'scoped memory for tpu_custom_call.1']
    #allocation4 [shape = 's32[1]{0}', space=sflag, size = 0x4, scoped, tag = 'scoped memory for tpu_custom_call.1']
    #allocation5 [shape = 'u8[8192]{0}', space=vmem, size = 0x2000, scoped, tag = 'output window, operand 0, single buffered']
    %7 = vsyncpa [#allocation3], 0
    %8 = vsyncpa [#allocation4], 0
    // Predicated region
    $region2: #{tpu_custom_call.1} parent=1 // pred_check
      _
    $region3: #{tpu_custom_call.1} parent=1 // pred_check_branch
      %10 = sbr.rel (0) target = $region5
    $region4: #{tpu_custom_call.1} parent=1 // pred_region
      %s12 = ssub.s32 256, 256
      %13 = vsyncadd [#allocation3], %s12
      %s14 = sshll.u32 [#allocation2], 4
      %s15 = int_to_ptr.vmem [resolvable:$true] %s14
      %20 = dma.hbm_to_vmem [thread:$0]  %s0, 256, %s15, [#allocation3], 128, 128, 8
    $region5: #{tpu_custom_call.1} parent=1 // pred_fallthru
      _
    // Predicated region
    $region6: #{tpu_custom_call.1} parent=1 // pred_check
      _
    $region7: #{tpu_custom_call.1} parent=1 // pred_check_branch
      %22 = sbr.rel (0) target = $region9
    $region8: #{tpu_custom_call.1} parent=1 // pred_region
      _
    $region9: #{tpu_custom_call.1} parent=1 // pred_fallthru
      _
    // Predicated region
    $region10: #{tpu_custom_call.1} parent=1 // pred_check
      _
    $region11: #{tpu_custom_call.1} parent=1 // pred_check_branch
      %24 = sbr.rel (0) target = $region13
    $region12: #{tpu_custom_call.1} parent=1 // pred_region
      %25 = dma.done [#allocation3], 256
    $region13: #{tpu_custom_call.1} parent=1 // pred_fallthru
      _
    %v26 = vld [vmem:[%s1] sm:$0xf]
    %s27 = scalar_lea.vmem %s1, 4
    %v28 = vld [vmem:[%s27] sm:$0xf]
    %s29 = scalar_lea.vmem %s1, 8
    %v30 = vld [vmem:[%s29] sm:$0xf]
    %v31 = vld [vmem:[#allocation2] sm:$0xff]
    %v32 = vld [vmem:[#allocation2 + $0x8] sm:$0xff]
    %v33 = vmul.f32 %v31, %v31
    %v34 = vmul.f32 %v32, %v32
    %v37 = vcombine.high %v33, %v33
    %v38 = vcombine.high %v34, %v34
    %vm41 = vcmask 1043456
    %v42 = vsel %vm41, %v33, 0.0
    %v43 = vsel %vm41, %v37, 0.0
    %v44 = vadd.f32 %v42, %v43
    %45 = vadd.xlane.f32.xlu0 %v44
    %v46 = vpop.xlane.xlu0 %45
    %v47 = vsel %vm41, %v34, 0.0
    %v48 = vsel %vm41, %v38, 0.0
    %v49 = vadd.f32 %v47, %v48
    %50 = vadd.xlane.f32.xlu0 %v49
    %v51 = vpop.xlane.xlu0 %50
    %v52 = vadd.f32 %v46, 1e-05
    %v53 = vadd.f32 %v51, 1e-05
    %v54 = vrsqrt.pop %v52
    %v55 = vmul.f32 %v52, %v54
    %vm56 = vcmp.eq.f32.partialorder %v52, inf
    %v57 = vsel %vm56, %v52, %v55
    %vm58 = vcmp.eq.f32.partialorder %v52, 0.0
    %v59 = vand.u32 %v52, 2147483648
    %v60 = vsel %vm58, %v59, %v57
    %v61 = vrsqrt.pop %v53
    %v62 = vmul.f32 %v53, %v61
    %vm63 = vcmp.eq.f32.partialorder %v53, inf
    %v64 = vsel %vm63, %v53, %v62
    %vm65 = vcmp.eq.f32.partialorder %v53, 0.0
    %v66 = vand.u32 %v53, 2147483648
    %v67 = vsel %vm65, %v66, %v64
    %v68 = vmul.f32 %v60, %v26
    %v69 = vmul.f32 %v67, %v26
    %v70 = vmul.f32 %v68, %v68
    %v71 = vmul.f32 %v69, %v69
    %vm72 = vcmask 3072
    %v73 = vsel %vm72, %v70, 0.0
    %v74 = vrot.slane %v73, 4
    %v75 = vadd.f32 %v73, %v74
    %v76 = vrot.slane %v75, 2
    %v77 = vadd.f32 %v75, %v76
    %v78 = vrot.slane %v77, 1
    %v79 = vadd.f32 %v77, %v78
    %v80 = vsel %vm72, %v71, 0.0
    %v81 = vrot.slane %v80, 4
    %v82 = vadd.f32 %v80, %v81
    %v83 = vrot.slane %v82, 2
    %v84 = vadd.f32 %v82, %v83
    %v85 = vrot.slane %v84, 1
    %v86 = vadd.f32 %v84, %v85
    %v87 = vrcp.pop 4.0
    %v88 = vmul.f32 %v79, %v87
    %v89 = vmul.f32 %v86, %v87
    %v90 = vadd.f32 %v88, 1e-05
    %v91 = vadd.f32 %v89, 1e-05
    %v92 = vrsqrt.pop %v90
    %v93 = vrsqrt.pop %v91
    %v94 = vmul.f32 %v28, %v92
    %v95 = vmul.f32 %v28, %v93
    %v96 = vmul.f32 %v68, %v94
    %v97 = vmul.f32 %v69, %v95
    %v98 = vadd.f32 %v96, %v30
    %v99 = vadd.f32 %v97, %v30
    %v100 = vmax.f32 %v98, 0.0
    %v101 = vmax.f32 %v99, 0.0
    %vm102 = vcmp.ne.f32.partialorder %v98, %v98
    %vm103 = vcmp.ne.f32.partialorder %v99, %v99
    %v104 = vadd.f32 %v98, 0.0
    %v105 = vadd.f32 %v99, 0.0
    %v106 = vand.u32 2147483647, %v98
    %v107 = vand.u32 2147483647, %v99
    %v108 = vsub.f32 0.0, %v106
    %v109 = vsub.f32 0.0, %v107
    %v110 = vmul.f32 %v108, 1.442695
    %v111 = vpow.pop %v110
    %v112 = vmul.f32 %v109, 1.442695
    %v113 = vpow.pop %v112
    %v114 = vadd.f32 %v111, 1.0
    %v115 = vlog2.pop %v114
    %v116 = vmul.f32 %v115, 0.6931472
    %v117 = vmul.f32 -0.5, %v111
    %v118 = vadd.f32 %v117, 1.0
    %v119 = vmul.f32 %v118, %v111
    %v120 = vand.u32 2147483647, %v111
    %vm121 = vcmp.lt.f32.partialorder %v120, 0.0004427343
    %v122 = vsel %vm121, %v119, %v116
    %v123 = vadd.f32 %v113, 1.0
    %v124 = vlog2.pop %v123
    %v125 = vmul.f32 %v124, 0.6931472
    %v126 = vmul.f32 -0.5, %v113
    %v127 = vadd.f32 %v126, 1.0
    %v128 = vmul.f32 %v127, %v113
    %v129 = vand.u32 2147483647, %v113
    %vm130 = vcmp.lt.f32.partialorder %v129, 0.0004427343
    %v131 = vsel %vm130, %v128, %v125
    %v132 = vadd.f32 %v100, %v122
    %v133 = vadd.f32 %v101, %v131
    %v134 = vsel %vm102, %v104, %v132
    %v135 = vsel %vm103, %v105, %v133
    %v136 = vtanh.pop %v134
    %v137 = vtanh.pop %v135
    %v138 = vadd.f32 %v136, 1.0
    %v139 = vadd.f32 %v137, 1.0
    %141 = vset.pattern.permute.xlu0 0
    %142 = vperm.xlu0 %141, %v138
    %v143 = vpop.permute.xlu0 %142
    %145 = vset.pattern.permute.xlu0 0
    %146 = vperm.xlu0 %145, %v139
    %v147 = vpop.permute.xlu0 %146
    %v149 = vunpack.c.l.s4 839922192
    %v150 = vunpack.c.0.s8 %v149
    %v151 = vlaneseq
    %v152 = vshrl.u32 %v151, 7
    %v153 = vsub.s32 %v150, %v152
    %v154 = vrot.slane %v143, %v153
    %v156 = vunpack.c.l.s4 839922192
    %v157 = vunpack.c.0.s8 %v156
    %v158 = vlaneseq
    %v159 = vshrl.u32 %v158, 7
    %v160 = vsub.s32 %v157, %v159
    %v161 = vrot.slane %v147, %v160
    %v164 = vmul.f32 %v31, %v154
    %v165 = vmul.f32 %v32, %v161
    %166 = vst [vmem:[#allocation5] sm:$0xff] %v164
    %167 = vst [vmem:[#allocation5 + $0x8] sm:$0xff] %v165
    // Predicated region
    $region14: #{tpu_custom_call.1} parent=1 // pred_check
      _
    $region15: #{tpu_custom_call.1} parent=1 // pred_check_branch
      %169 = sbr.rel (0) target = $region17
    $region16: #{tpu_custom_call.1} parent=1 // pred_region
      %s171 = ssub.s32 256, 256
      %172 = vsyncadd [#allocation4], %s171
      %s173 = sshll.u32 [#allocation5], 4
      %s174 = int_to_ptr.vmem [resolvable:$true] %s173
      %179 = dma.vmem_to_hbm [thread:$0]  %s174, 256, %s2, [#allocation4], 128, 128, 8
    $region17: #{tpu_custom_call.1} parent=1 // pred_fallthru
      _
    // Predicated region
    $region18: #{tpu_custom_call.1} parent=1 // pred_check
      _
    $region19: #{tpu_custom_call.1} parent=1 // pred_check_branch
      %181 = sbr.rel (0) target = $region21
    $region20: #{tpu_custom_call.1} parent=1 // pred_region
      %182 = dma.done [#allocation4], 256
    $region21: #{tpu_custom_call.1} parent=1 // pred_fallthru
      _
    %183 = vsyncpa [#allocation3], 1
    %184 = vsyncpa [#allocation4], 1

</llo_original>
